<compile_context>
chip_gen: v5e
topology: v5e:2x2
jax: 0.10.0
libtpu: 0.0.40
codegen_flags: <defaults>
</compile_context>

<pallas_src>
import functools

import jax
import jax.numpy as jnp
from jax.experimental import pallas as pl
from jax.experimental.pallas import tpu as pltpu

_LANE = 128
_MAX_BLOCK_ROWS = 8192   # (8192, 128) f32 tile = 4 MiB; 2 inputs x 2 bufs = 16 MiB
_CHUNK_ROWS = 512        # inner-loop chunk: (512, 128) f32 temporaries = 256 KiB


def _round_up(v, m):
    return (v + m - 1) // m * m


def _sublane_multiple(dtype):
    # Minimum second-minor tile: 8 rows (4B dtypes), 16 (2B), 32 (1B).
    return 8 * max(1, 4 // jnp.dtype(dtype).itemsize)


def _sigmoid(v):
    # sigmoid(v) == 0.5 * tanh(0.5 * v) + 0.5  -> one EUP tanh + 2 VALU ops.
    return 0.5 * jnp.tanh(0.5 * v) + 0.5


def _dice_kernel(x_ref, t_ref, o_ref, inter_acc, denom_acc, *,
                 rows_valid, block_rows, chunk_rows):
    i = pl.program_id(0)
    nsteps = pl.num_programs(0)

    @pl.when(i == 0)
    def _init():
        inter_acc[...] = jnp.zeros_like(inter_acc)
        denom_acc[...] = jnp.zeros_like(denom_acc)

    n_chunks = block_rows // chunk_rows
    groups = chunk_rows // 8
    block_row0 = i * block_rows

    def _accumulate(s, t):
        # vreg-shaped partial sums: the (groups, 8, 128) reduce is a stack of
        # elementwise vreg adds (pure VALU, no XLU); full cross-lane reduce
        # happens once in the wrapper.
        inter_acc[...] += jnp.sum((s * t).reshape(groups, 8, _LANE), axis=0)
        denom_acc[...] += jnp.sum((s + t).reshape(groups, 8, _LANE), axis=0)

    full_block = (block_row0 + block_rows) <= rows_valid

    @pl.when(full_block)
    def _steady_state():
        # Unmasked fast path: no iota / compare / select per element.
        def body(c, carry):
            r0 = pl.multiple_of(c * chunk_rows, chunk_rows)
            xc = x_ref[pl.ds(r0, chunk_rows), :].astype(jnp.float32)
            tc = t_ref[pl.ds(r0, chunk_rows), :].astype(jnp.float32)
            _accumulate(_sigmoid(xc), tc)
            return carry
        jax.lax.fori_loop(0, n_chunks, body, 0, unroll=True)

    @pl.when(jnp.logical_not(full_block))
    def _tail_block():
        # Only the ragged last block pays for row masking.  Masks are applied
        # to sigmoid(x) and t *before* the multiply/add so undefined padded
        # rows (possibly NaN) cannot propagate into the accumulators.
        row_iota = jax.lax.broadcasted_iota(jnp.int32, (chunk_rows, _LANE), 0)
        limit = rows_valid - block_row0

        def body(c, carry):
            r0 = pl.multiple_of(c * chunk_rows, chunk_rows)
            valid = (r0 + row_iota) < limit
            xc = x_ref[pl.ds(r0, chunk_rows), :].astype(jnp.float32)
            tc = t_ref[pl.ds(r0, chunk_rows), :].astype(jnp.float32)
            s = jnp.where(valid, _sigmoid(xc), 0.0)
            t = jnp.where(valid, tc, 0.0)
            _accumulate(s, t)
            return carry
        jax.lax.fori_loop(0, n_chunks, body, 0, unroll=True)

    @pl.when(i == nsteps - 1)
    def _finalize():
        o_ref[0, :, :] = inter_acc[...]
        o_ref[1, :, :] = denom_acc[...]


def dice_loss(inputs, targets, smooth=1.0):
    """Pallas TPU implementation of DiceLoss.forward (returns a scalar f32)."""
    x = inputs.reshape(-1)
    t = targets.reshape(-1)
    n = x.shape[0]
    if n == 0:  # degenerate: dice == smooth / smooth == 1
        return jnp.float32(0.0)

    # Lane-aligned prefix streams through the kernel; the (<128 element) lane
    # tail is reduced with plain jnp here (no O(N) concatenate-pad copy).
    rows = n // _LANE
    tail = n - rows * _LANE

    intersection = jnp.float32(0.0)
    denom = jnp.float32(0.0)
    if tail:
        xt = jax.nn.sigmoid(x[rows * _LANE:].astype(jnp.float32))
        tt = t[rows * _LANE:].astype(jnp.float32)
        intersection = intersection + jnp.sum(xt * tt)
        denom = denom + jnp.sum(xt) + jnp.sum(tt)

    if rows > 0:
        x2 = x[: rows * _LANE].reshape(rows, _LANE)
        t2 = t[: rows * _LANE].reshape(rows, _LANE)

        sub = max(_sublane_multiple(x2.dtype), _sublane_multiple(t2.dtype))
        block_rows = min(_MAX_BLOCK_ROWS, _round_up(rows, sub))
        chunk_rows = min(_CHUNK_ROWS, block_rows)
        block_rows = _round_up(block_rows, chunk_rows)
        steps = pl.cdiv(rows, block_rows)

        kernel = functools.partial(
            _dice_kernel, rows_valid=rows, block_rows=block_rows,
            chunk_rows=chunk_rows)

        out = pl.pallas_call(
            kernel,
            out_shape=jax.ShapeDtypeStruct((2, 8, _LANE), jnp.float32),
            grid_spec=pltpu.PrefetchScalarGridSpec(
                num_scalar_prefetch=0,
                grid=(steps,),
                in_specs=[
                    pl.BlockSpec((block_rows, _LANE), lambda i: (i, 0)),
                    pl.BlockSpec((block_rows, _LANE), lambda i: (i, 0)),
                ],
                out_specs=pl.BlockSpec((2, 8, _LANE), lambda i: (0, 0, 0)),
                scratch_shapes=[
                    pltpu.VMEM((8, _LANE), jnp.float32),  # sum(sigmoid(x) * t)
                    pltpu.VMEM((8, _LANE), jnp.float32),  # sum(sigmoid(x) + t)
                ],
            ),
            compiler_params=pltpu.CompilerParams(
                dimension_semantics=("arbitrary",),
                vmem_limit_bytes=48 * 1024 * 1024,
            ),
        )(x2, t2)

        intersection = intersection + jnp.sum(out[0])
        denom = denom + jnp.sum(out[1])

    dice = (2.0 * intersection + smooth) / (denom + smooth)
    return (1.0 - dice).astype(jnp.float32)


def dice_loss_ref(inputs, targets, smooth=1.0):
    x = jax.nn.sigmoid(inputs.astype(jnp.float32)).reshape(-1)
    t = targets.astype(jnp.float32).reshape(-1)
    intersection = jnp.sum(x * t)
    dice = (2.0 * intersection + smooth) / (jnp.sum(x) + jnp.sum(t) + smooth)
    return 1.0 - dice


if __name__ == "__main__":
    key = jax.random.PRNGKey(0)
    k_in, k_tg, k_in2, k_tg2 = jax.random.split(key, 4)

    # Small NCHW shapes: batch=2, channels=4, spatial=16x16.
    inputs = jax.random.normal(k_in, (2, 4, 16, 16), dtype=jnp.float32)
    targets = (jax.random.uniform(k_tg, (2, 4, 16, 16)) > 0.5).astype(jnp.float32)

    loss = jax.block_until_ready(dice_loss(inputs, targets, smooth=1.0))
    ref = jax.block_until_ready(dice_loss_ref(inputs, targets, smooth=1.0))
    assert jnp.allclose(loss, ref, atol=1e-5, rtol=1e-5), (loss, ref)

    # Larger case exercising the multi-chunk inner loop and accumulator path.
    inputs2 = jax.random.normal(k_in2, (2, 4, 256, 384), dtype=jnp.float32)
    targets2 = (jax.random.uniform(k_tg2, (2, 4, 256, 384)) > 0.5).astype(jnp.float32)

    loss2 = jax.block_until_ready(dice_loss(inputs2, targets2, smooth=1.0))
    ref2 = jax.block_until_ready(dice_loss_ref(inputs2, targets2, smooth=1.0))
    assert jnp.allclose(loss2, ref2, atol=1e-4, rtol=1e-4), (loss2, ref2)

    # Ragged case: total elements not a multiple of 128 -> wrapper lane-tail
    # path plus the masked tail block inside the kernel.
    inputs3 = jax.random.normal(k_in, (3, 5, 31, 37), dtype=jnp.float32)
    targets3 = (jax.random.uniform(k_tg, (3, 5, 31, 37)) > 0.5).astype(jnp.float32)

    loss3 = jax.block_until_ready(dice_loss(inputs3, targets3, smooth=1.0))
    ref3 = jax.block_until_ready(dice_loss_ref(inputs3, targets3, smooth=1.0))
    assert jnp.allclose(loss3, ref3, atol=1e-5, rtol=1e-5), (loss3, ref3)

    print("KERNEL_OK")
</pallas_src>

<mosaic_0001>
module attributes {stable_mosaic.version = 11 : i64} {
  func.func @_dice_kernel(%arg0: i32, %arg1: memref<16x128xf32, #tpu.memory_space<vmem>>, %arg2: memref<16x128xf32, #tpu.memory_space<vmem>>, %arg3: memref<2x8x128xf32, #tpu.memory_space<vmem>>, %arg4: memref<8x128xf32, #tpu.memory_space<vmem>>, %arg5: memref<8x128xf32, #tpu.memory_space<vmem>>) attributes {dimension_semantics = [#tpu.dimension_semantics<arbitrary>], iteration_bounds = array<i64: 1>, scalar_prefetch = 0 : i64, scratch_operands = 2 : i64, tpu.core_type = #tpu.core_type<tc>, window_params = [{transform_indices = @transform_0, window_bounds = array<i64: 16, 128>}, {transform_indices = @transform_1, window_bounds = array<i64: 16, 128>}, {pipeline_mode = #tpu.pipeline_mode<synchronous>, transform_indices = @transform_2, window_bounds = array<i64: 2, 8, 128>}]} {
    %c0_i32 = arith.constant 0 : i32
    %0 = arith.cmpi eq, %arg0, %c0_i32 : i32
    %1 = arith.extui %0 : i1 to i32
    %c0_i32_0 = arith.constant 0 : i32
    %2 = arith.cmpi ne, %1, %c0_i32_0 : i32
    scf.if %2 {
      %cst = arith.constant 0.000000e+00 : f32
      %14 = vector.broadcast %cst : f32 to vector<8x128xf32>
      %c0 = arith.constant 0 : index
      %c0_7 = arith.constant 0 : index
      %15 = vector.load %arg4[%c0, %c0_7] : memref<8x128xf32, #tpu.memory_space<vmem>>, vector<8x128xf32>
      tpu.vector_store %arg4[%c0, %c0_7], %14 {strides = array<i32>} : memref<8x128xf32, #tpu.memory_space<vmem>>, vector<8x128xf32>,
      %cst_8 = arith.constant 0.000000e+00 : f32
      %16 = vector.broadcast %cst_8 : f32 to vector<8x128xf32>
      %c0_9 = arith.constant 0 : index
      %c0_10 = arith.constant 0 : index
      %17 = vector.load %arg5[%c0_9, %c0_10] : memref<8x128xf32, #tpu.memory_space<vmem>>, vector<8x128xf32>
      tpu.vector_store %arg5[%c0_9, %c0_10], %16 {strides = array<i32>} : memref<8x128xf32, #tpu.memory_space<vmem>>, vector<8x128xf32>,
    } else {
    }
    %c16_i32 = arith.constant 16 : i32
    %3 = arith.muli %arg0, %c16_i32 : i32
    %c16_i32_1 = arith.constant 16 : i32
    %4 = arith.addi %3, %c16_i32_1 : i32
    %c16_i32_2 = arith.constant 16 : i32
    %5 = arith.cmpi sle, %4, %c16_i32_2 : i32
    %6 = arith.extui %5 : i1 to i32
    %c0_i32_3 = arith.constant 0 : i32
    %7 = arith.cmpi ne, %6, %c0_i32_3 : i32
    scf.if %7 {
      %c0_i32_7 = arith.constant 0 : i32
      %c16_i32_8 = arith.constant 16 : i32
      %14 = arith.muli %c0_i32_7, %c16_i32_8 : i32
      %15 = tpu.assume_multiple %14, 16 : i32
      %16 = arith.index_cast %15 : i32 to index
      %c0 = arith.constant 0 : index
      %17 = vector.load %arg1[%16, %c0] : memref<16x128xf32, #tpu.memory_space<vmem>>, vector<16x128xf32>
      %18 = arith.index_cast %15 : i32 to index
      %c0_9 = arith.constant 0 : index
      %19 = vector.load %arg2[%18, %c0_9] : memref<16x128xf32, #tpu.memory_space<vmem>>, vector<16x128xf32>
      %cst = arith.constant 5.000000e-01 : f32
      %20 = vector.broadcast %cst : f32 to vector<16x128xf32>
      %21 = arith.mulf %20, %17 : vector<16x128xf32>
      %22 = math.tanh %21 : vector<16x128xf32>
      %cst_10 = arith.constant 5.000000e-01 : f32
      %23 = vector.broadcast %cst_10 : f32 to vector<16x128xf32>
      %24 = arith.mulf %23, %22 : vector<16x128xf32>
      %cst_11 = arith.constant 5.000000e-01 : f32
      %25 = vector.broadcast %cst_11 : f32 to vector<16x128xf32>
      %26 = arith.addf %24, %25 : vector<16x128xf32>
      %c0_12 = arith.constant 0 : index
      %c0_13 = arith.constant 0 : index
      %27 = vector.load %arg4[%c0_12, %c0_13] : memref<8x128xf32, #tpu.memory_space<vmem>>, vector<8x128xf32>
      %28 = arith.mulf %26, %19 : vector<16x128xf32>
      %29 = vector.shape_cast %28 : vector<16x128xf32> to vector<2x8x128xf32>
      %cst_14 = arith.constant dense<0.000000e+00> : vector<8x128xf32>
      %30 = vector.multi_reduction <add>, %29, %cst_14 [0] : vector<2x8x128xf32> to vector<8x128xf32>
      %31 = arith.addf %27, %30 : vector<8x128xf32>
      %c0_15 = arith.constant 0 : index
      %c0_16 = arith.constant 0 : index
      %32 = vector.load %arg4[%c0_15, %c0_16] : memref<8x128xf32, #tpu.memory_space<vmem>>, vector<8x128xf32>
      tpu.vector_store %arg4[%c0_15, %c0_16], %31 {strides = array<i32>} : memref<8x128xf32, #tpu.memory_space<vmem>>, vector<8x128xf32>,
      %c0_17 = arith.constant 0 : index
      %c0_18 = arith.constant 0 : index
      %33 = vector.load %arg5[%c0_17, %c0_18] : memref<8x128xf32, #tpu.memory_space<vmem>>, vector<8x128xf32>
      %34 = arith.addf %26, %19 : vector<16x128xf32>
      %35 = vector.shape_cast %34 : vector<16x128xf32> to vector<2x8x128xf32>
      %cst_19 = arith.constant dense<0.000000e+00> : vector<8x128xf32>
      %36 = vector.multi_reduction <add>, %35, %cst_19 [0] : vector<2x8x128xf32> to vector<8x128xf32>
      %37 = arith.addf %33, %36 : vector<8x128xf32>
      %c0_20 = arith.constant 0 : index
      %c0_21 = arith.constant 0 : index
      %38 = vector.load %arg5[%c0_20, %c0_21] : memref<8x128xf32, #tpu.memory_space<vmem>>, vector<8x128xf32>
      tpu.vector_store %arg5[%c0_20, %c0_21], %37 {strides = array<i32>} : memref<8x128xf32, #tpu.memory_space<vmem>>, vector<8x128xf32>,
      %c1_i32 = arith.constant 1 : i32
    } else {
    }
    %true = arith.constant true
    %8 = arith.xori %5, %true : i1
    %9 = arith.extui %8 : i1 to i32
    %c0_i32_4 = arith.constant 0 : i32
    %10 = arith.cmpi ne, %9, %c0_i32_4 : i32
    scf.if %10 {
      %14 = tpu.iota {dimensions = array<i32: 0>} : vector<16x128xi32>
      %c16_i32_7 = arith.constant 16 : i32
      %15 = arith.subi %c16_i32_7, %3 : i32
      %c0_i32_8 = arith.constant 0 : i32
      %c16_i32_9 = arith.constant 16 : i32
      %16 = arith.muli %c0_i32_8, %c16_i32_9 : i32
      %17 = tpu.assume_multiple %16, 16 : i32
      %18 = vector.broadcast %17 : i32 to vector<16x128xi32>
      %19 = arith.addi %18, %14 : vector<16x128xi32>
      %20 = vector.broadcast %15 : i32 to vector<16x128xi32>
      %21 = arith.cmpi slt, %19, %20 : vector<16x128xi32>
      %22 = arith.index_cast %17 : i32 to index
      %c0 = arith.constant 0 : index
      %23 = vector.load %arg1[%22, %c0] : memref<16x128xf32, #tpu.memory_space<vmem>>, vector<16x128xf32>
      %24 = arith.index_cast %17 : i32 to index
      %c0_10 = arith.constant 0 : index
      %25 = vector.load %arg2[%24, %c0_10] : memref<16x128xf32, #tpu.memory_space<vmem>>, vector<16x128xf32>
      %cst = arith.constant 5.000000e-01 : f32
      %26 = vector.broadcast %cst : f32 to vector<16x128xf32>
      %27 = arith.mulf %26, %23 : vector<16x128xf32>
      %28 = math.tanh %27 : vector<16x128xf32>
      %cst_11 = arith.constant 5.000000e-01 : f32
      %29 = vector.broadcast %cst_11 : f32 to vector<16x128xf32>
      %30 = arith.mulf %29, %28 : vector<16x128xf32>
      %cst_12 = arith.constant 5.000000e-01 : f32
      %31 = vector.broadcast %cst_12 : f32 to vector<16x128xf32>
      %32 = arith.addf %30, %31 : vector<16x128xf32>
      %cst_13 = arith.constant 0.000000e+00 : f32
      %33 = vector.broadcast %cst_13 : f32 to vector<16x128xf32>
      %34 = arith.select %21, %32, %33 : vector<16x128xi1>, vector<16x128xf32>
      %cst_14 = arith.constant 0.000000e+00 : f32
      %35 = vector.broadcast %cst_14 : f32 to vector<16x128xf32>
      %36 = arith.select %21, %25, %35 : vector<16x128xi1>, vector<16x128xf32>
      %c0_15 = arith.constant 0 : index
      %c0_16 = arith.constant 0 : index
      %37 = vector.load %arg4[%c0_15, %c0_16] : memref<8x128xf32, #tpu.memory_space<vmem>>, vector<8x128xf32>
      %38 = arith.mulf %34, %36 : vector<16x128xf32>
      %39 = vector.shape_cast %38 : vector<16x128xf32> to vector<2x8x128xf32>
      %cst_17 = arith.constant dense<0.000000e+00> : vector<8x128xf32>
      %40 = vector.multi_reduction <add>, %39, %cst_17 [0] : vector<2x8x128xf32> to vector<8x128xf32>
      %41 = arith.addf %37, %40 : vector<8x128xf32>
      %c0_18 = arith.constant 0 : index
      %c0_19 = arith.constant 0 : index
      %42 = vector.load %arg4[%c0_18, %c0_19] : memref<8x128xf32, #tpu.memory_space<vmem>>, vector<8x128xf32>
      tpu.vector_store %arg4[%c0_18, %c0_19], %41 {strides = array<i32>} : memref<8x128xf32, #tpu.memory_space<vmem>>, vector<8x128xf32>,
      %c0_20 = arith.constant 0 : index
      %c0_21 = arith.constant 0 : index
      %43 = vector.load %arg5[%c0_20, %c0_21] : memref<8x128xf32, #tpu.memory_space<vmem>>, vector<8x128xf32>
      %44 = arith.addf %34, %36 : vector<16x128xf32>
      %45 = vector.shape_cast %44 : vector<16x128xf32> to vector<2x8x128xf32>
      %cst_22 = arith.constant dense<0.000000e+00> : vector<8x128xf32>
      %46 = vector.multi_reduction <add>, %45, %cst_22 [0] : vector<2x8x128xf32> to vector<8x128xf32>
      %47 = arith.addf %43, %46 : vector<8x128xf32>
      %c0_23 = arith.constant 0 : index
      %c0_24 = arith.constant 0 : index
      %48 = vector.load %arg5[%c0_23, %c0_24] : memref<8x128xf32, #tpu.memory_space<vmem>>, vector<8x128xf32>
      tpu.vector_store %arg5[%c0_23, %c0_24], %47 {strides = array<i32>} : memref<8x128xf32, #tpu.memory_space<vmem>>, vector<8x128xf32>,
      %c1_i32 = arith.constant 1 : i32
    } else {
    }
    %c0_i32_5 = arith.constant 0 : i32
    %11 = arith.cmpi eq, %arg0, %c0_i32_5 : i32
    %12 = arith.extui %11 : i1 to i32
    %c0_i32_6 = arith.constant 0 : i32
    %13 = arith.cmpi ne, %12, %c0_i32_6 : i32
    scf.if %13 {
      %c0 = arith.constant 0 : index
      %c0_7 = arith.constant 0 : index
      %14 = vector.load %arg4[%c0, %c0_7] : memref<8x128xf32, #tpu.memory_space<vmem>>, vector<8x128xf32>
      %c0_8 = arith.constant 0 : index
      %c0_9 = arith.constant 0 : index
      %c0_10 = arith.constant 0 : index
      %15 = vector.load %arg3[%c0_8, %c0_9, %c0_10] : memref<2x8x128xf32, #tpu.memory_space<vmem>>, vector<1x8x128xf32>
      %16 = vector.shape_cast %15 : vector<1x8x128xf32> to vector<8x128xf32>
      %17 = vector.shape_cast %14 : vector<8x128xf32> to vector<1x8x128xf32>
      tpu.vector_store %arg3[%c0_8, %c0_9, %c0_10], %17 {strides = array<i32>} : memref<2x8x128xf32, #tpu.memory_space<vmem>>, vector<1x8x128xf32>,
      %c0_11 = arith.constant 0 : index
      %c0_12 = arith.constant 0 : index
      %18 = vector.load %arg5[%c0_11, %c0_12] : memref<8x128xf32, #tpu.memory_space<vmem>>, vector<8x128xf32>
      %c1 = arith.constant 1 : index
      %c0_13 = arith.constant 0 : index
      %c0_14 = arith.constant 0 : index
      %19 = vector.load %arg3[%c1, %c0_13, %c0_14] : memref<2x8x128xf32, #tpu.memory_space<vmem>>, vector<1x8x128xf32>
      %20 = vector.shape_cast %19 : vector<1x8x128xf32> to vector<8x128xf32>
      %21 = vector.shape_cast %18 : vector<8x128xf32> to vector<1x8x128xf32>
      tpu.vector_store %arg3[%c1, %c0_13, %c0_14], %21 {strides = array<i32>} : memref<2x8x128xf32, #tpu.memory_space<vmem>>, vector<1x8x128xf32>,
    } else {
    }
    return
  }
  func.func @transform_0(%arg0: i32) -> (i32, i32) {
    %c0_i32 = arith.constant 0 : i32
    %c0_i32_0 = arith.constant 0 : i32
    return %arg0, %c0_i32 : i32, i32
  }
  func.func @transform_1(%arg0: i32) -> (i32, i32) {
    %c0_i32 = arith.constant 0 : i32
    %c0_i32_0 = arith.constant 0 : i32
    return %arg0, %c0_i32 : i32, i32
  }
  func.func @transform_2(%arg0: i32) -> (i32, i32, i32) {
    %c0_i32 = arith.constant 0 : i32
    %c0_i32_0 = arith.constant 0 : i32
    %c0_i32_1 = arith.constant 0 : i32
    %c0_i32_2 = arith.constant 0 : i32
    return %c0_i32, %c0_i32_0, %c0_i32_1 : i32, i32, i32
  }
}

</mosaic_0001>

<llo_original>
// kernel: tpu_custom_call.1
$region0: #{tpu_custom_call.1}
  #allocation0 [shape = 'u32[]', space=smem, size = 0x4, offset = 0x4, fixed_abs, tag = 'smem constant byte address 0x4 - core index']
  #allocation1 [shape = 'u32[72,128]{1,0:T(1,128)}', space=vmem, size = 0x9000, scoped, tag = 'internal scratch']
  #allocation2 [shape = 'f32[8,128]{1,0:T(8,128)}', space=vmem, size = 0x1000, scoped, tag = 'scratch operand']
  #allocation3 [shape = 'f32[8,128]{1,0:T(8,128)}', space=vmem, size = 0x1000, scoped, tag = 'scratch operand']
  %s0 = inlined_call_operand.hbm [shape: f32[16,128], index: 0, kind: input, shape index: {}]
  %s1 = inlined_call_operand.hbm [shape: f32[16,128], index: 1, kind: input, shape index: {}]
  %s2 = inlined_call_operand.hbm [shape: f32[2,8,128], index: 2, kind: output, shape index: {}]
  %s3 = sld [smem:[#allocation0]]
  $region42: #{tpu_custom_call.1} parent=0
    _
  %s5 = ssub.s32 1, %s3
  %s6 = scalar_select 0, %s5, %s3
  $region1: #{tpu_custom_call.1} parent=0
    #allocation4 [shape = 'u8[8192]{0}', space=vmem, size = 0x2000, scoped, tag = 'input window, operand 0, single buffered']
    #allocation5 [shape = 's32[1]{0}', space=sflag, size = 0x4, scoped, tag = 'scoped memory for tpu_custom_call.1']
    #allocation6 [shape = 's32[1]{0}', space=sflag, size = 0x4, scoped, tag = 'scoped memory for tpu_custom_call.1']
    #allocation7 [shape = 'u8[8192]{0}', space=vmem, size = 0x2000, scoped, tag = 'input window, operand 1, single buffered']
    #allocation8 [shape = 's32[1]{0}', space=sflag, size = 0x4, scoped, tag = 'scoped memory for tpu_custom_call.1']
    #allocation9 [shape = 'u8[8192]{0}', space=vmem, size = 0x2000, scoped, tag = 'output window, operand 0, single buffered']
    %7 = vsyncpa [#allocation5], 0
    %8 = vsyncpa [#allocation8], 0
    %9 = vsyncpa [#allocation6], 0
    // Predicated region
    $region2: #{tpu_custom_call.1} parent=1 // pred_check
      _
    $region3: #{tpu_custom_call.1} parent=1 // pred_check_branch
      %11 = sbr.rel (0) target = $region5
    $region4: #{tpu_custom_call.1} parent=1 // pred_region
      %13 = vsyncadd [#allocation5], 0
      %s14 = sshll.u32 %s0, 4
      %s15 = int_to_ptr.hbm [resolvable:$true] %s14
      %s16 = sshll.u32 [#allocation4], 4
      %s17 = int_to_ptr.vmem [resolvable:$true] %s16
      %22 = dma.hbm_to_vmem [thread:$0]  %s15, 256, %s17, [#allocation5], 128, 128, 8
    $region5: #{tpu_custom_call.1} parent=1 // pred_fallthru
      _
    // Predicated region
    $region6: #{tpu_custom_call.1} parent=1 // pred_check
      _
    $region7: #{tpu_custom_call.1} parent=1 // pred_check_branch
      %24 = sbr.rel (0) target = $region9
    $region8: #{tpu_custom_call.1} parent=1 // pred_region
      %26 = vsyncadd [#allocation8], 0
      %s27 = sshll.u32 %s1, 4
      %s28 = int_to_ptr.hbm [resolvable:$true] %s27
      %s29 = sshll.u32 [#allocation7], 4
      %s30 = int_to_ptr.vmem [resolvable:$true] %s29
      %35 = dma.hbm_to_vmem [thread:$0]  %s28, 256, %s30, [#allocation8], 128, 128, 8
    $region9: #{tpu_custom_call.1} parent=1 // pred_fallthru
      _
    // Predicated region
    $region10: #{tpu_custom_call.1} parent=1 // pred_check
      _
    $region11: #{tpu_custom_call.1} parent=1 // pred_check_branch
      %37 = sbr.rel (0) target = $region13
    $region12: #{tpu_custom_call.1} parent=1 // pred_region
      %39 = dma.done [#allocation5], 256
    $region13: #{tpu_custom_call.1} parent=1 // pred_fallthru
      _
    // Predicated region
    $region14: #{tpu_custom_call.1} parent=1 // pred_check
      _
    $region15: #{tpu_custom_call.1} parent=1 // pred_check_branch
      %41 = sbr.rel (0) target = $region17
    $region16: #{tpu_custom_call.1} parent=1 // pred_region
      %43 = dma.done [#allocation8], 256
    $region17: #{tpu_custom_call.1} parent=1 // pred_fallthru
      _
    %p44 = scmp.eq.s32.totalorder 0, 0
    // Predicated region
    $region18: #{tpu_custom_call.1} parent=1 // pred_check
      %p45 = pneg %p44
    $region19: #{tpu_custom_call.1} parent=1 // pred_check_branch
      %47 = sbr.rel (%p45) target = $region21
    $region20: #{tpu_custom_call.1} parent=1 // pred_region
      %48 = vst [vmem:[#allocation2] sm:$0xff] 0.0
      %49 = vst [vmem:[#allocation3] sm:$0xff] 0.0
    $region21: #{tpu_custom_call.1} parent=1 // pred_fallthru
      _
    %s50 = smul.u32 0, 16
    %s51 = sadd.s32 %s50, 16
    %p52 = scmp.le.s32.totalorder %s51, 16
    // Predicated region
    $region22: #{tpu_custom_call.1} parent=1 // pred_check
      %p53 = pneg %p52
    $region23: #{tpu_custom_call.1} parent=1 // pred_check_branch
      %55 = sbr.rel (%p53) target = $region25
    $region24: #{tpu_custom_call.1} parent=1 // pred_region
      %v56 = vld [vmem:[#allocation4] sm:$0xff]
      %v57 = vld [vmem:[#allocation4 + $0x8] sm:$0xff]
      %v58 = vld [vmem:[#allocation7] sm:$0xff]
      %v59 = vld [vmem:[#allocation7 + $0x8] sm:$0xff]
      %v60 = vmul.f32 %v56, 0.5
      %v61 = vmul.f32 %v57, 0.5
      %v62 = vtanh.pop %v60
      %v63 = vtanh.pop %v61
      %v64 = vmul.f32 %v62, 0.5
      %v65 = vmul.f32 %v63, 0.5
      %v66 = vadd.f32 %v64, 0.5
      %v67 = vadd.f32 %v65, 0.5
      %v68 = vld [vmem:[#allocation2] sm:$0xff]
      %v69 = vmul.f32 %v66, %v58
      %v70 = vmul.f32 %v67, %v59
      %v71 = vadd.f32 %v69, %v70
      %v72 = vadd.f32 %v68, %v71
      %73 = vst [vmem:[#allocation2] sm:$0xff] %v72
      %v74 = vld [vmem:[#allocation3] sm:$0xff]
      %v75 = vadd.f32 %v66, %v58
      %v76 = vadd.f32 %v67, %v59
      %v77 = vadd.f32 %v75, %v76
      %v78 = vadd.f32 %v74, %v77
      %79 = vst [vmem:[#allocation3] sm:$0xff] %v78
    $region25: #{tpu_custom_call.1} parent=1 // pred_fallthru
      _
    %p80 = scmp.gt.s32.totalorder %s51, 16
    // Predicated region
    $region26: #{tpu_custom_call.1} parent=1 // pred_check
      %p81 = pneg %p80
    $region27: #{tpu_custom_call.1} parent=1 // pred_check_branch
      %83 = sbr.rel (%p81) target = $region29
    $region28: #{tpu_custom_call.1} parent=1 // pred_region
      %v84 = vlaneseq
      %v85 = vshrl.u32 %v84, 7
      %v86 = vadd.s32 %v85, 8
      %s87 = ssub.s32 16, %s50
      %v88 = vstv 0
      %v89 = vadd.s32 %v88, %v85
      %v90 = vadd.s32 %v88, %v86
      %v91 = vstv %s87
      %vm92 = vcmp.lt.s32.totalorder %v89, %v91
      %vm93 = vcmp.lt.s32.totalorder %v90, %v91
      %v94 = vld [vmem:[#allocation4] sm:$0xff]
      %v95 = vld [vmem:[#allocation4 + $0x8] sm:$0xff]
      %v96 = vld [vmem:[#allocation7] sm:$0xff]
      %v97 = vld [vmem:[#allocation7 + $0x8] sm:$0xff]
      %v98 = vmul.f32 %v94, 0.5
      %v99 = vmul.f32 %v95, 0.5
      %v100 = vtanh.pop %v98
      %v101 = vtanh.pop %v99
      %v102 = vmul.f32 %v100, 0.5
      %v103 = vmul.f32 %v101, 0.5
      %v104 = vadd.f32 %v102, 0.5
      %v105 = vadd.f32 %v103, 0.5
      %v106 = vsel %vm92, %v104, 0.0
      %v107 = vsel %vm93, %v105, 0.0
      %v108 = vsel %vm92, %v96, 0.0
      %v109 = vsel %vm93, %v97, 0.0
      %v110 = vld [vmem:[#allocation2] sm:$0xff]
      %v111 = vmul.f32 %v106, %v108
      %v112 = vmul.f32 %v107, %v109
      %v113 = vadd.f32 %v111, %v112
      %v114 = vadd.f32 %v110, %v113
      %115 = vst [vmem:[#allocation2] sm:$0xff] %v114
      %v116 = vld [vmem:[#allocation3] sm:$0xff]
      %v117 = vadd.f32 %v106, %v108
      %v118 = vadd.f32 %v107, %v109
      %v119 = vadd.f32 %v117, %v118
      %v120 = vadd.f32 %v116, %v119
      %121 = vst [vmem:[#allocation3] sm:$0xff] %v120
    $region29: #{tpu_custom_call.1} parent=1 // pred_fallthru
      _
    // Predicated region
    $region30: #{tpu_custom_call.1} parent=1 // pred_check
      %p122 = pneg %p44
    $region31: #{tpu_custom_call.1} parent=1 // pred_check_branch
      %124 = sbr.rel (%p122) target = $region33
    $region32: #{tpu_custom_call.1} parent=1 // pred_region
      %v125 = vld [vmem:[#allocation2] sm:$0xff]
      %126 = vst [vmem:[#allocation9] sm:$0xff] %v125
      %v127 = vld [vmem:[#allocation3] sm:$0xff]
      %s128 = scalar_lea.vmem [#allocation9], 8
      %129 = vst [vmem:[%s128] sm:$0xff] %v127
    $region33: #{tpu_custom_call.1} parent=1 // pred_fallthru
      _
    // Predicated region
    $region34: #{tpu_custom_call.1} parent=1 // pred_check
      _
    $region35: #{tpu_custom_call.1} parent=1 // pred_check_branch
      %131 = sbr.rel (0) target = $region37
    $region36: #{tpu_custom_call.1} parent=1 // pred_region
      %133 = vsyncadd [#allocation6], 0
      %s134 = sshll.u32 [#allocation9], 4
      %s135 = int_to_ptr.vmem [resolvable:$true] %s134
      %s136 = sshll.u32 %s2, 4
      %s137 = int_to_ptr.hbm [resolvable:$true] %s136
      %142 = dma.vmem_to_hbm [thread:$0]  %s135, 256, %s137, [#allocation6], 128, 128, 8
    $region37: #{tpu_custom_call.1} parent=1 // pred_fallthru
      _
    // Predicated region
    $region38: #{tpu_custom_call.1} parent=1 // pred_check
      _
    $region39: #{tpu_custom_call.1} parent=1 // pred_check_branch
      %144 = sbr.rel (0) target = $region41
    $region40: #{tpu_custom_call.1} parent=1 // pred_region
      %146 = dma.done [#allocation6], 256
    $region41: #{tpu_custom_call.1} parent=1 // pred_fallthru
      _
    %147 = vsyncpa [#allocation5], 1
    %148 = vsyncpa [#allocation8], 1
    %149 = vsyncpa [#allocation6], 1

</llo_original>
